<compile_context>
chip_gen: v5e
topology: v5e:2x2
jax: 0.10.0
libtpu: 0.0.40
codegen_flags: <defaults>
</compile_context>

<pallas_src>
import jax
import jax.numpy as jnp
from jax.experimental import pallas as pl
from jax.experimental.pallas import tpu as pltpu

_LANE_WIDTH = 1024          # lane-dense last dim (large multiple of 128)
_MAX_TILE_ROWS = 512        # 512 x 1024 f32 = 2 MiB / tile
_PALLAS_MIN_ELEMS = 4096    # below this, dispatch overhead dominates -> no kernel


def _identity_copy_kernel(x_ref, o_ref):
    # Pure pass-through of one (tm, width) tile.
    o_ref[...] = x_ref[...]


def _pallas_identity_tiled(x2d: jax.Array) -> jax.Array:
    """Tiled, pipelined, aliased identity copy of a lane-dense 2-D array."""
    rows, width = x2d.shape
    tm = min(_MAX_TILE_ROWS, rows)          # block == full dim when rows < 512
    grid = (pl.cdiv(rows, tm),)
    nbytes = x2d.size * x2d.dtype.itemsize
    return pl.pallas_call(
        _identity_copy_kernel,
        out_shape=jax.ShapeDtypeStruct(x2d.shape, x2d.dtype),
        grid=grid,
        in_specs=[pl.BlockSpec((tm, width), lambda i: (i, 0))],
        out_specs=pl.BlockSpec((tm, width), lambda i: (i, 0)),
        input_output_aliases={0: 0},
        compiler_params=pltpu.CompilerParams(
            dimension_semantics=("parallel",)),
        cost_estimate=pl.CostEstimate(
            flops=0, transcendentals=0, bytes_accessed=2 * nbytes),
    )(x2d)


class LossExtractFromBatchDict:
    """JAX/Pallas port of fuse.dl.losses.loss_extract.LossExtractFromBatchDict.

    __init__(key): remembers the dict key to read the loss from.
    __call__(batch_dict): returns batch_dict[key] unchanged. Tiny/scalar losses
    are returned directly (no kernel); large losses take a tiled, aliased
    Pallas identity-copy path.
    """

    def __init__(self, key: str) -> None:
        self.key = key

    def __call__(self, batch_dict: dict) -> jax.Array:
        loss = jnp.asarray(batch_dict[self.key])

        # Fast path: scalar or tiny loss -- kernel launch would be pure overhead.
        if loss.ndim == 0 or loss.size < _PALLAS_MIN_ELEMS:
            return loss

        # Lane-dense reshape for the copy kernel. If the flat size is not a
        # multiple of the lane width, identity semantics let us return directly
        # instead of paying for padding + masked partial stores.
        size = loss.size
        if size % _LANE_WIDTH == 0:
            width = _LANE_WIDTH
        elif size % 128 == 0:
            width = 128
        else:
            return loss

        flat = loss.reshape(size // width, width)
        out = _pallas_identity_tiled(flat)
        return out.reshape(loss.shape)


if __name__ == "__main__":
    key = jax.random.PRNGKey(0)
    k_vec, k_scalar, k_tok = jax.random.split(key, 3)

    batch, seq, hidden = 2, 8, 512
    # A model would have placed these losses in the batch dict already; we
    # synthesize them deterministically here.
    per_sample_loss = jax.random.uniform(k_vec, (batch,), dtype=jnp.float32)
    scalar_loss = jax.random.uniform(k_scalar, (), dtype=jnp.float32)
    per_token_loss = jax.random.uniform(
        k_tok, (batch, seq, hidden), dtype=jnp.float32)

    batch_dict = {
        "losses.cls_loss": per_sample_loss,
        "losses.total_loss": scalar_loss,
        "losses.token_loss": per_token_loss,
    }

    # Per-sample (tiny) loss: fast path, no kernel launch.
    out_vec = LossExtractFromBatchDict("losses.cls_loss")(batch_dict)
    jax.block_until_ready(out_vec)
    assert out_vec.shape == per_sample_loss.shape
    assert out_vec.dtype == per_sample_loss.dtype
    assert bool(jnp.all(out_vec == per_sample_loss))

    # Scalar loss: fast path.
    out_scalar = LossExtractFromBatchDict("losses.total_loss")(batch_dict)
    jax.block_until_ready(out_scalar)
    assert out_scalar.shape == ()
    assert bool(out_scalar == scalar_loss)

    # Per-token loss: large enough to take the tiled, aliased Pallas copy path.
    out_tok = LossExtractFromBatchDict("losses.token_loss")(batch_dict)
    jax.block_until_ready(out_tok)
    assert out_tok.shape == per_token_loss.shape
    assert out_tok.dtype == per_token_loss.dtype
    assert bool(jnp.all(out_tok == per_token_loss))

    print("KERNEL_OK")
</pallas_src>

<mosaic_0001>
module attributes {stable_mosaic.version = 11 : i64} {
  func.func @_identity_copy_kernel(%arg0: i32, %arg1: memref<8x1024xf32, #tpu.memory_space<vmem>>, %arg2: memref<8x1024xf32, #tpu.memory_space<vmem>>) attributes {dimension_semantics = [#tpu.dimension_semantics<parallel>], iteration_bounds = array<i64: 1>, scalar_prefetch = 0 : i64, scratch_operands = 0 : i64, tpu.core_type = #tpu.core_type<tc>, window_params = [{transform_indices = @transform_0, window_bounds = array<i64: 8, 1024>}, {transform_indices = @transform_1, window_bounds = array<i64: 8, 1024>}]} {
    %c0 = arith.constant 0 : index
    %c0_0 = arith.constant 0 : index
    %0 = vector.load %arg1[%c0, %c0_0] : memref<8x1024xf32, #tpu.memory_space<vmem>>, vector<8x1024xf32>
    %c0_1 = arith.constant 0 : index
    %c0_2 = arith.constant 0 : index
    %1 = vector.load %arg2[%c0_1, %c0_2] : memref<8x1024xf32, #tpu.memory_space<vmem>>, vector<8x1024xf32>
    tpu.vector_store %arg2[%c0_1, %c0_2], %0 {strides = array<i32>} : memref<8x1024xf32, #tpu.memory_space<vmem>>, vector<8x1024xf32>,
    return
  }
  func.func @transform_0(%arg0: i32) -> (i32, i32) {
    %c0_i32 = arith.constant 0 : i32
    %c0_i32_0 = arith.constant 0 : i32
    return %arg0, %c0_i32 : i32, i32
  }
  func.func @transform_1(%arg0: i32) -> (i32, i32) {
    %c0_i32 = arith.constant 0 : i32
    %c0_i32_0 = arith.constant 0 : i32
    return %arg0, %c0_i32 : i32, i32
  }
}

</mosaic_0001>

<llo_original>
// kernel: tpu_custom_call.1
$region0: #{tpu_custom_call.1}
  #allocation0 [shape = 'u32[]', space=smem, size = 0x4, offset = 0x4, fixed_abs, tag = 'smem constant byte address 0x4 - core index']
  #allocation1 [shape = 'u32[72,128]{1,0:T(1,128)}', space=vmem, size = 0x9000, scoped, tag = 'internal scratch']
  %s0 = inlined_call_operand.hbm [shape: f32[8,1024], index: 0, kind: input, shape index: {}, may-alias: {0,1}]
  %s1 = inlined_call_operand.hbm [shape: f32[8,1024], index: 1, kind: output, shape index: {}, may-alias: {0,1}]
  %s2 = sld [smem:[#allocation0]]
  $region18: #{tpu_custom_call.1} parent=0
    _
  %s4 = ssub.s32 1, %s2
  %s5 = scalar_select 0, %s4, %s2
  $region1: #{tpu_custom_call.1} parent=0
    #allocation2 [shape = 'u8[32768]{0}', space=vmem, size = 0x8000, scoped, tag = 'input window, operand 0, single buffered']
    #allocation3 [shape = 's32[1]{0}', space=sflag, size = 0x4, scoped, tag = 'scoped memory for tpu_custom_call.1']
    #allocation4 [shape = 's32[1]{0}', space=sflag, size = 0x4, scoped, tag = 'scoped memory for tpu_custom_call.1']
    #allocation5 [shape = 'u8[32768]{0}', space=vmem, size = 0x8000, scoped, tag = 'output window, operand 0, single buffered']
    %6 = vsyncpa [#allocation3], 0
    %7 = vsyncpa [#allocation4], 0
    // Predicated region
    $region2: #{tpu_custom_call.1} parent=1 // pred_check
      _
    $region3: #{tpu_custom_call.1} parent=1 // pred_check_branch
      %9 = sbr.rel (0) target = $region5
    $region4: #{tpu_custom_call.1} parent=1 // pred_region
      %11 = vsyncadd [#allocation3], 0
      %s13 = sshll.u32 %s0, 4
      %s14 = int_to_ptr.hbm [resolvable:$true] %s13
      %s15 = sshll.u32 [#allocation2], 4
      %s16 = int_to_ptr.vmem [resolvable:$true] %s15
      %18 = dma.hbm_to_vmem [thread:$0]  %s14, 1024, %s16, [#allocation3]
    $region5: #{tpu_custom_call.1} parent=1 // pred_fallthru
      _
    // Predicated region
    $region6: #{tpu_custom_call.1} parent=1 // pred_check
      _
    $region7: #{tpu_custom_call.1} parent=1 // pred_check_branch
      %20 = sbr.rel (0) target = $region9
    $region8: #{tpu_custom_call.1} parent=1 // pred_region
      %22 = dma.done [#allocation3], 1024
    $region9: #{tpu_custom_call.1} parent=1 // pred_fallthru
      _
    %v23 = vld [vmem:[#allocation2] sm:$0xff]
    %v24 = vld [vmem:[#allocation2 + $0x8] sm:$0xff]
    %v25 = vld [vmem:[#allocation2 + $0x10] sm:$0xff]
    %v26 = vld [vmem:[#allocation2 + $0x18] sm:$0xff]
    %v27 = vld [vmem:[#allocation2 + $0x20] sm:$0xff]
    %v28 = vld [vmem:[#allocation2 + $0x28] sm:$0xff]
    %v29 = vld [vmem:[#allocation2 + $0x30] sm:$0xff]
    %v30 = vld [vmem:[#allocation2 + $0x38] sm:$0xff]
    %31 = vst [vmem:[#allocation5] sm:$0xff] %v23
    %32 = vst [vmem:[#allocation5 + $0x8] sm:$0xff] %v24
    %33 = vst [vmem:[#allocation5 + $0x10] sm:$0xff] %v25
    %34 = vst [vmem:[#allocation5 + $0x18] sm:$0xff] %v26
    %35 = vst [vmem:[#allocation5 + $0x20] sm:$0xff] %v27
    %36 = vst [vmem:[#allocation5 + $0x28] sm:$0xff] %v28
    %37 = vst [vmem:[#allocation5 + $0x30] sm:$0xff] %v29
    %38 = vst [vmem:[#allocation5 + $0x38] sm:$0xff] %v30
    // Predicated region
    $region10: #{tpu_custom_call.1} parent=1 // pred_check
      _
    $region11: #{tpu_custom_call.1} parent=1 // pred_check_branch
      %40 = sbr.rel (0) target = $region13
    $region12: #{tpu_custom_call.1} parent=1 // pred_region
      %42 = vsyncadd [#allocation4], 0
      %s44 = sshll.u32 [#allocation5], 4
      %s45 = int_to_ptr.vmem [resolvable:$true] %s44
      %s46 = sshll.u32 %s1, 4
      %s47 = int_to_ptr.hbm [resolvable:$true] %s46
      %49 = dma.vmem_to_hbm [thread:$0]  %s45, 1024, %s47, [#allocation4]
    $region13: #{tpu_custom_call.1} parent=1 // pred_fallthru
      _
    // Predicated region
    $region14: #{tpu_custom_call.1} parent=1 // pred_check
      _
    $region15: #{tpu_custom_call.1} parent=1 // pred_check_branch
      %51 = sbr.rel (0) target = $region17
    $region16: #{tpu_custom_call.1} parent=1 // pred_region
      %53 = dma.done [#allocation4], 1024
    $region17: #{tpu_custom_call.1} parent=1 // pred_fallthru
      _
    %54 = vsyncpa [#allocation3], 1
    %55 = vsyncpa [#allocation4], 1

</llo_original>
